<compile_context>
chip_gen: v5e
topology: v5e:2x2
jax: 0.10.0
libtpu: 0.0.40
codegen_flags: <defaults>
</compile_context>

<pallas_src>
import jax
import jax.numpy as jnp
from jax.experimental import pallas as pl
from jax.experimental.pallas import tpu as pltpu

KSIZE, STRIDE, PAD = 4, 2, 1
BN_EPS = 1e-5
LANE = 128


def _round_up(x, m):
    return (x + m - 1) // m * m


def _im2col(x):
    """x: (N, C, H, W) -> (N*OH*OW, C*16), OH, OW.
    K-axis ordering is c*16 + kh*4 + kw, matching weight.reshape(OC, C*16)."""
    N, C, H, W = x.shape
    OH = (H + 2 * PAD - KSIZE) // STRIDE + 1
    OW = (W + 2 * PAD - KSIZE) // STRIDE + 1
    xp = jnp.pad(x, ((0, 0), (0, 0), (PAD, PAD), (PAD, PAD)))
    cols = []
    for kh in range(KSIZE):
        for kw in range(KSIZE):
            cols.append(xp[:, :, kh:kh + STRIDE * OH:STRIDE,
                              kw:kw + STRIDE * OW:STRIDE])      # (N, C, OH, OW)
    cols = jnp.stack(cols, axis=-1)          # (N, C, OH, OW, 16)
    cols = cols.transpose(0, 2, 3, 1, 4)     # (N, OH, OW, C, 16)
    return cols.reshape(N * OH * OW, C * KSIZE * KSIZE), OH, OW
    # TODO(synk): further win would be fusing patch extraction into the kernel
    # (strided reads from an NHWC input kept in HBM) to avoid the 16x im2col blow-up.


def _matmul_stats_kernel(p_ref, w_ref, y_ref, sum_ref, sq_ref, acc_ref):
    # p_ref: (TM, TK) bf16 patches, w_ref: (TK, OCp) bf16 weights,
    # y_ref: (TM, OCp) f32 conv output tile,
    # sum_ref / sq_ref: (1, OCp) f32 per-channel sum / sum-of-squares (resident accumulators),
    # acc_ref: (TM, OCp) f32 VMEM scratch accumulator over K tiles.
    i = pl.program_id(0)          # M-tile index
    k = pl.program_id(1)          # K-tile index (reduction, innermost)
    nk = pl.num_programs(1)

    @pl.when(k == 0)
    def _init_acc():
        acc_ref[...] = jnp.zeros_like(acc_ref)

    acc_ref[...] += jnp.dot(p_ref[...], w_ref[...],
                            preferred_element_type=jnp.float32)   # MXU, f32 accum

    @pl.when(jnp.logical_and(i == 0, k == nk - 1))
    def _init_stats():
        sum_ref[...] = jnp.zeros_like(sum_ref)
        sq_ref[...] = jnp.zeros_like(sq_ref)

    @pl.when(k == nk - 1)
    def _finalize_tile():
        y = acc_ref[...]
        y_ref[...] = y
        sum_ref[...] += jnp.sum(y, axis=0, keepdims=True)
        sq_ref[...] += jnp.sum(y * y, axis=0, keepdims=True)


def _bn_relu_kernel(y_ref, scale_ref, shift_ref, o_ref):
    # y_ref: (TM, OCp) f32, scale_ref/shift_ref: (1, OCp) f32 (folded BN affine).
    o_ref[...] = jnp.maximum(
        y_ref[...] * scale_ref[...] + shift_ref[...], 0.0).astype(o_ref.dtype)


def down_forward(x, weight, gamma, beta):
    """x: (N, C_in, H, W) f32, weight: (C_out, C_in, 4, 4), gamma/beta: (C_out,).
    Returns (N, C_out, H//2, W//2) f32 (NCHW, like the PyTorch module)."""
    N, C, H, W = x.shape
    OC = weight.shape[0]
    K = C * KSIZE * KSIZE

    # im2col in bf16 (halves patch HBM traffic; matmul accumulates in f32).
    patches, OH, OW = _im2col(x.astype(jnp.bfloat16))
    M = patches.shape[0]

    # --- pad to lane-dense / MXU-friendly shapes ---
    OCp = _round_up(OC, LANE)
    Kp0 = _round_up(K, LANE)
    TK = 512 if Kp0 >= 512 else Kp0
    Kp = _round_up(Kp0, TK)
    TM = min(1024, _round_up(M, 8))
    Mp = _round_up(M, TM)
    grid_m = Mp // TM
    grid_k = Kp // TK

    patches_p = jnp.zeros((Mp, Kp), jnp.bfloat16).at[:M, :K].set(patches)
    w_p = jnp.zeros((Kp, OCp), jnp.bfloat16).at[:K, :OC].set(
        weight.reshape(OC, K).T.astype(jnp.bfloat16))
    g_p = jnp.ones((1, OCp), jnp.float32).at[0, :OC].set(gamma.astype(jnp.float32))
    b_p = jnp.zeros((1, OCp), jnp.float32).at[0, :OC].set(beta.astype(jnp.float32))

    # ---------- phase 1: conv-as-matmul + per-channel sum / sumsq ----------
    p1_need = (2 * TM * TK * 2          # double-buffered bf16 patch tiles
               + 2 * TK * OCp * 2       # double-buffered bf16 weight tiles
               + 2 * TM * OCp * 4       # double-buffered f32 y output tiles
               + TM * OCp * 4           # f32 accumulator scratch
               + 8 * OCp * 4)           # stats output blocks
    p1_vmem = int(min(48 * 2**20, max(2 * p1_need, 8 * 2**20)))

    y_flat, ch_sum, ch_sq = pl.pallas_call(
        _matmul_stats_kernel,
        out_shape=(jax.ShapeDtypeStruct((Mp, OCp), jnp.float32),
                   jax.ShapeDtypeStruct((1, OCp), jnp.float32),
                   jax.ShapeDtypeStruct((1, OCp), jnp.float32)),
        grid=(grid_m, grid_k),
        in_specs=[pl.BlockSpec((TM, TK), lambda i, k: (i, k)),
                  pl.BlockSpec((TK, OCp), lambda i, k: (k, 0))],
        out_specs=(pl.BlockSpec((TM, OCp), lambda i, k: (i, 0)),
                   pl.BlockSpec((1, OCp), lambda i, k: (0, 0)),
                   pl.BlockSpec((1, OCp), lambda i, k: (0, 0))),
        scratch_shapes=[pltpu.VMEM((TM, OCp), jnp.float32)],
        compiler_params=pltpu.CompilerParams(
            # cross-tile stats accumulation requires sequential M; K is a reduction.
            dimension_semantics=("arbitrary", "arbitrary"),
            vmem_limit_bytes=p1_vmem),
    )(patches_p, w_p)

    # ---------- fold BN(train) affine into scale/shift (tiny, plain JAX) ----------
    mean = ch_sum / M                                    # (1, OCp), real M (zero-pad rows contribute 0)
    var = jnp.maximum(ch_sq / M - mean * mean, 0.0)      # biased variance (training mode)
    inv = jax.lax.rsqrt(var + BN_EPS)
    scale = inv * g_p
    shift = b_p - mean * scale

    # ---------- phase 2: normalize + ReLU (embarrassingly parallel over M tiles) ----------
    p2_need = 4 * TM * OCp * 4 + 4 * OCp * 4
    p2_vmem = int(min(48 * 2**20, max(2 * p2_need, 8 * 2**20)))

    out = pl.pallas_call(
        _bn_relu_kernel,
        out_shape=jax.ShapeDtypeStruct((Mp, OCp), jnp.float32),
        grid=(grid_m,),
        in_specs=[pl.BlockSpec((TM, OCp), lambda i: (i, 0)),
                  pl.BlockSpec((1, OCp), lambda i: (0, 0)),
                  pl.BlockSpec((1, OCp), lambda i: (0, 0))],
        out_specs=pl.BlockSpec((TM, OCp), lambda i: (i, 0)),
        compiler_params=pltpu.CompilerParams(
            dimension_semantics=("parallel",),
            vmem_limit_bytes=p2_vmem),
    )(y_flat, scale, shift)

    # strip padding, (M, OC) -> (N, OH, OW, OC) -> NCHW (to match PyTorch output layout)
    out = out[:M, :OC].reshape(N, OH, OW, OC)
    return out.transpose(0, 3, 1, 2)


if __name__ == "__main__":
    key = jax.random.PRNGKey(0)
    kx, kw = jax.random.split(key)

    N, C_in, H, W = 2, 4, 16, 16
    C_out = 8

    x = jax.random.normal(kx, (N, C_in, H, W), dtype=jnp.float32)
    # Conv2d weight (bias=False); deterministic synthetic init.
    weight = 0.05 * jax.random.normal(kw, (C_out, C_in, KSIZE, KSIZE),
                                      dtype=jnp.float32)
    # BatchNorm2d default init: weight=1, bias=0.
    gamma = jnp.ones((C_out,), dtype=jnp.float32)
    beta = jnp.zeros((C_out,), dtype=jnp.float32)
    # TODO(synk): dropout=0.0 in the reference default, so no dropout layer is applied.

    y = down_forward(x, weight, gamma, beta)
    jax.block_until_ready(y)
    assert y.shape == (N, C_out, H // 2, W // 2)
    print("KERNEL_OK")
</pallas_src>

<mosaic_0001>
module attributes {stable_mosaic.version = 11 : i64} {
  func.func @_matmul_stats_kernel(%arg0: i32, %arg1: i32, %arg2: memref<128x128xbf16, #tpu.memory_space<vmem>>, %arg3: memref<128x128xbf16, #tpu.memory_space<vmem>>, %arg4: memref<128x128xf32, #tpu.memory_space<vmem>>, %arg5: memref<1x128xf32, #tpu.memory_space<vmem>>, %arg6: memref<1x128xf32, #tpu.memory_space<vmem>>, %arg7: memref<128x128xf32, #tpu.memory_space<vmem>>) attributes {dimension_semantics = [#tpu.dimension_semantics<arbitrary>, #tpu.dimension_semantics<arbitrary>], iteration_bounds = array<i64: 1, 1>, scalar_prefetch = 0 : i64, scratch_operands = 1 : i64, tpu.core_type = #tpu.core_type<tc>, window_params = [{transform_indices = @transform_0, window_bounds = array<i64: 128, 128>}, {transform_indices = @transform_1, window_bounds = array<i64: 128, 128>}, {transform_indices = @transform_2, window_bounds = array<i64: 128, 128>}, {pipeline_mode = #tpu.pipeline_mode<synchronous>, transform_indices = @transform_3, window_bounds = array<i64: 1, 128>}, {pipeline_mode = #tpu.pipeline_mode<synchronous>, transform_indices = @transform_4, window_bounds = array<i64: 1, 128>}]} {
    %c0_i32 = arith.constant 0 : i32
    %0 = arith.cmpi eq, %arg1, %c0_i32 : i32
    %1 = arith.extui %0 : i1 to i32
    %c0_i32_0 = arith.constant 0 : i32
    %2 = arith.cmpi ne, %1, %c0_i32_0 : i32
    scf.if %2 {
      %cst_13 = arith.constant 0.000000e+00 : f32
      %17 = vector.broadcast %cst_13 : f32 to vector<128x128xf32>
      %c0_14 = arith.constant 0 : index
      %c0_15 = arith.constant 0 : index
      %18 = vector.load %arg7[%c0_14, %c0_15] : memref<128x128xf32, #tpu.memory_space<vmem>>, vector<128x128xf32>
      tpu.vector_store %arg7[%c0_14, %c0_15], %17 {strides = array<i32>} : memref<128x128xf32, #tpu.memory_space<vmem>>, vector<128x128xf32>,
    } else {
    }
    %c0 = arith.constant 0 : index
    %c0_1 = arith.constant 0 : index
    %3 = vector.load %arg7[%c0, %c0_1] : memref<128x128xf32, #tpu.memory_space<vmem>>, vector<128x128xf32>
    %c0_2 = arith.constant 0 : index
    %c0_3 = arith.constant 0 : index
    %4 = vector.load %arg2[%c0_2, %c0_3] : memref<128x128xbf16, #tpu.memory_space<vmem>>, vector<128x128xbf16>
    %c0_4 = arith.constant 0 : index
    %c0_5 = arith.constant 0 : index
    %5 = vector.load %arg3[%c0_4, %c0_5] : memref<128x128xbf16, #tpu.memory_space<vmem>>, vector<128x128xbf16>
    %cst = arith.constant dense<0.000000e+00> : vector<128x128xf32>
    %6 = tpu.matmul %4, %5, %cst {dimension_numbers = #tpu.dot_dimension_numbers<[1], [0], [0], [1], [0, 0, 1, 1], [], []>} : vector<128x128xbf16>, vector<128x128xbf16>, vector<128x128xf32> -> vector<128x128xf32>
    %7 = arith.addf %3, %6 : vector<128x128xf32>
    %c0_6 = arith.constant 0 : index
    %c0_7 = arith.constant 0 : index
    %8 = vector.load %arg7[%c0_6, %c0_7] : memref<128x128xf32, #tpu.memory_space<vmem>>, vector<128x128xf32>
    tpu.vector_store %arg7[%c0_6, %c0_7], %7 {strides = array<i32>} : memref<128x128xf32, #tpu.memory_space<vmem>>, vector<128x128xf32>,
    %c0_i32_8 = arith.constant 0 : i32
    %9 = arith.cmpi eq, %arg0, %c0_i32_8 : i32
    %c0_i32_9 = arith.constant 0 : i32
    %10 = arith.cmpi eq, %arg1, %c0_i32_9 : i32
    %11 = arith.andi %9, %10 : i1
    %12 = arith.extui %11 : i1 to i32
    %c0_i32_10 = arith.constant 0 : i32
    %13 = arith.cmpi ne, %12, %c0_i32_10 : i32
    scf.if %13 {
      %cst_13 = arith.constant 0.000000e+00 : f32
      %17 = vector.broadcast %cst_13 : f32 to vector<1x128xf32>
      %c0_14 = arith.constant 0 : index
      %c0_15 = arith.constant 0 : index
      %18 = vector.load %arg5[%c0_14, %c0_15] : memref<1x128xf32, #tpu.memory_space<vmem>>, vector<1x128xf32>
      tpu.vector_store %arg5[%c0_14, %c0_15], %17 {strides = array<i32>} : memref<1x128xf32, #tpu.memory_space<vmem>>, vector<1x128xf32>,
      %cst_16 = arith.constant 0.000000e+00 : f32
      %19 = vector.broadcast %cst_16 : f32 to vector<1x128xf32>
      %c0_17 = arith.constant 0 : index
      %c0_18 = arith.constant 0 : index
      %20 = vector.load %arg6[%c0_17, %c0_18] : memref<1x128xf32, #tpu.memory_space<vmem>>, vector<1x128xf32>
      tpu.vector_store %arg6[%c0_17, %c0_18], %19 {strides = array<i32>} : memref<1x128xf32, #tpu.memory_space<vmem>>, vector<1x128xf32>,
    } else {
    }
    %c0_i32_11 = arith.constant 0 : i32
    %14 = arith.cmpi eq, %arg1, %c0_i32_11 : i32
    %15 = arith.extui %14 : i1 to i32
    %c0_i32_12 = arith.constant 0 : i32
    %16 = arith.cmpi ne, %15, %c0_i32_12 : i32
    scf.if %16 {
      %c0_13 = arith.constant 0 : index
      %c0_14 = arith.constant 0 : index
      %17 = vector.load %arg7[%c0_13, %c0_14] : memref<128x128xf32, #tpu.memory_space<vmem>>, vector<128x128xf32>
      %c0_15 = arith.constant 0 : index
      %c0_16 = arith.constant 0 : index
      %18 = vector.load %arg4[%c0_15, %c0_16] : memref<128x128xf32, #tpu.memory_space<vmem>>, vector<128x128xf32>
      tpu.vector_store %arg4[%c0_15, %c0_16], %17 {strides = array<i32>} : memref<128x128xf32, #tpu.memory_space<vmem>>, vector<128x128xf32>,
      %c0_17 = arith.constant 0 : index
      %c0_18 = arith.constant 0 : index
      %19 = vector.load %arg5[%c0_17, %c0_18] : memref<1x128xf32, #tpu.memory_space<vmem>>, vector<1x128xf32>
      %cst_19 = arith.constant dense<0.000000e+00> : vector<128xf32>
      %20 = vector.multi_reduction <add>, %17, %cst_19 [0] : vector<128x128xf32> to vector<128xf32>
      %21 = vector.shape_cast %20 : vector<128xf32> to vector<1x128xf32>
      %22 = arith.addf %19, %21 : vector<1x128xf32>
      %c0_20 = arith.constant 0 : index
      %c0_21 = arith.constant 0 : index
      %23 = vector.load %arg5[%c0_20, %c0_21] : memref<1x128xf32, #tpu.memory_space<vmem>>, vector<1x128xf32>
      tpu.vector_store %arg5[%c0_20, %c0_21], %22 {strides = array<i32>} : memref<1x128xf32, #tpu.memory_space<vmem>>, vector<1x128xf32>,
      %c0_22 = arith.constant 0 : index
      %c0_23 = arith.constant 0 : index
      %24 = vector.load %arg6[%c0_22, %c0_23] : memref<1x128xf32, #tpu.memory_space<vmem>>, vector<1x128xf32>
      %25 = arith.mulf %17, %17 : vector<128x128xf32>
      %cst_24 = arith.constant dense<0.000000e+00> : vector<128xf32>
      %26 = vector.multi_reduction <add>, %25, %cst_24 [0] : vector<128x128xf32> to vector<128xf32>
      %27 = vector.shape_cast %26 : vector<128xf32> to vector<1x128xf32>
      %28 = arith.addf %24, %27 : vector<1x128xf32>
      %c0_25 = arith.constant 0 : index
      %c0_26 = arith.constant 0 : index
      %29 = vector.load %arg6[%c0_25, %c0_26] : memref<1x128xf32, #tpu.memory_space<vmem>>, vector<1x128xf32>
      tpu.vector_store %arg6[%c0_25, %c0_26], %28 {strides = array<i32>} : memref<1x128xf32, #tpu.memory_space<vmem>>, vector<1x128xf32>,
    } else {
    }
    return
  }
  func.func @transform_0(%arg0: i32, %arg1: i32) -> (i32, i32) {
    %c0_i32 = arith.constant 0 : i32
    return %arg0, %arg1 : i32, i32
  }
  func.func @transform_1(%arg0: i32, %arg1: i32) -> (i32, i32) {
    %c0_i32 = arith.constant 0 : i32
    %c0_i32_0 = arith.constant 0 : i32
    return %arg1, %c0_i32 : i32, i32
  }
  func.func @transform_2(%arg0: i32, %arg1: i32) -> (i32, i32) {
    %c0_i32 = arith.constant 0 : i32
    %c0_i32_0 = arith.constant 0 : i32
    return %arg0, %c0_i32 : i32, i32
  }
  func.func @transform_3(%arg0: i32, %arg1: i32) -> (i32, i32) {
    %c0_i32 = arith.constant 0 : i32
    %c0_i32_0 = arith.constant 0 : i32
    %c0_i32_1 = arith.constant 0 : i32
    return %c0_i32, %c0_i32_0 : i32, i32
  }
  func.func @transform_4(%arg0: i32, %arg1: i32) -> (i32, i32) {
    %c0_i32 = arith.constant 0 : i32
    %c0_i32_0 = arith.constant 0 : i32
    %c0_i32_1 = arith.constant 0 : i32
    return %c0_i32, %c0_i32_0 : i32, i32
  }
}

</mosaic_0001>

<llo_original>
// kernel: tpu_custom_call.1
$region0: #{tpu_custom_call.1}
  #allocation0 [shape = 'u32[]', space=smem, size = 0x4, offset = 0x4, fixed_abs, tag = 'smem constant byte address 0x4 - core index']
  #allocation1 [shape = 'u32[72,128]{1,0:T(1,128)}', space=vmem, size = 0x9000, scoped, tag = 'internal scratch']
  #allocation2 [shape = 'f32[128,128]{1,0:T(8,128)}', space=vmem, size = 0x10000, scoped, tag = 'scratch operand']
  %s0 = inlined_call_operand.hbm [shape: bf16[128,128], index: 0, kind: input, shape index: {}]
  %s1 = inlined_call_operand.hbm [shape: bf16[128,128], index: 1, kind: input, shape index: {}]
  %s2 = inlined_call_operand.hbm [shape: f32[128,128], index: 2, kind: output, shape index: {0}]
  %s3 = inlined_call_operand.hbm [shape: f32[1,128], index: 3, kind: output, shape index: {1}]
  %s4 = inlined_call_operand.hbm [shape: f32[1,128], index: 4, kind: output, shape index: {2}]
  %5 = xla_tuple %s2, %s3, %s4
  %s6 = sld [smem:[#allocation0]]
  $region54: #{tpu_custom_call.1} parent=0
    _
  %s8 = ssub.s32 1, %s6
  %s9 = scalar_select 0, %s8, %s6
  $region1: #{tpu_custom_call.1} parent=0
    #allocation3 [shape = 'u8[32768]{0}', space=vmem, size = 0x8000, scoped, tag = 'input window, operand 0, single buffered']
    #allocation4 [shape = 's32[1]{0}', space=sflag, size = 0x4, scoped, tag = 'scoped memory for tpu_custom_call.1']
    #allocation5 [shape = 's32[1]{0}', space=sflag, size = 0x4, scoped, tag = 'scoped memory for tpu_custom_call.1']
    #allocation6 [shape = 'u8[32768]{0}', space=vmem, size = 0x8000, scoped, tag = 'input window, operand 1, single buffered']
    #allocation7 [shape = 's32[1]{0}', space=sflag, size = 0x4, scoped, tag = 'scoped memory for tpu_custom_call.1']
    #allocation8 [shape = 'u8[65536]{0}', space=vmem, size = 0x10000, scoped, tag = 'output window, operand 0, single buffered']
    #allocation9 [shape = 'u8[512]{0}', space=vmem, size = 0x400, scoped, tag = 'output window, operand 1, single buffered']
    #allocation10 [shape = 's32[1]{0}', space=sflag, size = 0x4, scoped, tag = 'scoped memory for tpu_custom_call.1']
    #allocation11 [shape = 'u8[512]{0}', space=vmem, size = 0x400, scoped, tag = 'output window, operand 2, single buffered']
    %10 = vsyncpa [#allocation4], 0
    %11 = vsyncpa [#allocation7], 0
    %12 = vsyncpa [#allocation5], 0
    %13 = vsyncpa [#allocation10], 0
    // Predicated region
    $region2: #{tpu_custom_call.1} parent=1 // pred_check
      _
    $region3: #{tpu_custom_call.1} parent=1 // pred_check_branch
      %15 = sbr.rel (0) target = $region5
    $region4: #{tpu_custom_call.1} parent=1 // pred_region
      %17 = vsyncadd [#allocation4], 0
      %s18 = sshll.u32 %s0, 4
      %s19 = int_to_ptr.hbm [resolvable:$true] %s18
      %s20 = sshll.u32 [#allocation3], 4
      %s21 = int_to_ptr.vmem [resolvable:$true] %s20
      %26 = dma.hbm_to_vmem [thread:$0]  %s19, 1024, %s21, [#allocation4], 64, 64, 4
    $region5: #{tpu_custom_call.1} parent=1 // pred_fallthru
      _
    // Predicated region
    $region6: #{tpu_custom_call.1} parent=1 // pred_check
      _
    $region7: #{tpu_custom_call.1} parent=1 // pred_check_branch
      %28 = sbr.rel (0) target = $region9
    $region8: #{tpu_custom_call.1} parent=1 // pred_region
      %30 = vsyncadd [#allocation7], 0
      %s31 = sshll.u32 %s1, 4
      %s32 = int_to_ptr.hbm [resolvable:$true] %s31
      %s33 = sshll.u32 [#allocation6], 4
      %s34 = int_to_ptr.vmem [resolvable:$true] %s33
      %39 = dma.hbm_to_vmem [thread:$0]  %s32, 1024, %s34, [#allocation7], 64, 64, 4
    $region9: #{tpu_custom_call.1} parent=1 // pred_fallthru
      _
    // Predicated region
    $region10: #{tpu_custom_call.1} parent=1 // pred_check
      _
    $region11: #{tpu_custom_call.1} parent=1 // pred_check_branch
      %41 = sbr.rel (0) target = $region13
    $region12: #{tpu_custom_call.1} parent=1 // pred_region
      %43 = dma.done [#allocation4], 1024
    $region13: #{tpu_custom_call.1} parent=1 // pred_fallthru
      _
    // Predicated region
    $region14: #{tpu_custom_call.1} parent=1 // pred_check
      _
    $region15: #{tpu_custom_call.1} parent=1 // pred_check_branch
      %45 = sbr.rel (0) target = $region17
    $region16: #{tpu_custom_call.1} parent=1 // pred_region
      %47 = dma.done [#allocation7], 1024
    $region17: #{tpu_custom_call.1} parent=1 // pred_fallthru
      _
    %p48 = scmp.eq.s32.totalorder 0, 0
    // Predicated region
    $region18: #{tpu_custom_call.1} parent=1 // pred_check
      %p49 = pneg %p48
    $region19: #{tpu_custom_call.1} parent=1 // pred_check_branch
      %51 = sbr.rel (%p49) target = $region21
    $region20: #{tpu_custom_call.1} parent=1 // pred_region
      %52 = vst [vmem:[#allocation2] sm:$0xff] 0.0
      %53 = vst [vmem:[#allocation2 + $0x8] sm:$0xff] 0.0
      %54 = vst [vmem:[#allocation2 + $0x10] sm:$0xff] 0.0
      %55 = vst [vmem:[#allocation2 + $0x18] sm:$0xff] 0.0
      %56 = vst [vmem:[#allocation2 + $0x20] sm:$0xff] 0.0
      %57 = vst [vmem:[#allocation2 + $0x28] sm:$0xff] 0.0
      %58 = vst [vmem:[#allocation2 + $0x30] sm:$0xff] 0.0
      %59 = vst [vmem:[#allocation2 + $0x38] sm:$0xff] 0.0
      %60 = vst [vmem:[#allocation2 + $0x40] sm:$0xff] 0.0
      %61 = vst [vmem:[#allocation2 + $0x48] sm:$0xff] 0.0
      %62 = vst [vmem:[#allocation2 + $0x50] sm:$0xff] 0.0
      %63 = vst [vmem:[#allocation2 + $0x58] sm:$0xff] 0.0
      %64 = vst [vmem:[#allocation2 + $0x60] sm:$0xff] 0.0
      %65 = vst [vmem:[#allocation2 + $0x68] sm:$0xff] 0.0
      %66 = vst [vmem:[#allocation2 + $0x70] sm:$0xff] 0.0
      %67 = vst [vmem:[#allocation2 + $0x78] sm:$0xff] 0.0
    $region21: #{tpu_custom_call.1} parent=1 // pred_fallthru
      _
    %v68 = vld [vmem:[#allocation2] sm:$0xff]
    %v69 = vld [vmem:[#allocation2 + $0x8] sm:$0xff]
    %v70 = vld [vmem:[#allocation2 + $0x10] sm:$0xff]
    %v71 = vld [vmem:[#allocation2 + $0x18] sm:$0xff]
    %v72 = vld [vmem:[#allocation2 + $0x20] sm:$0xff]
    %v73 = vld [vmem:[#allocation2 + $0x28] sm:$0xff]
    %v74 = vld [vmem:[#allocation2 + $0x30] sm:$0xff]
    %v75 = vld [vmem:[#allocation2 + $0x38] sm:$0xff]
    %v76 = vld [vmem:[#allocation2 + $0x40] sm:$0xff]
    %v77 = vld [vmem:[#allocation2 + $0x48] sm:$0xff]
    %v78 = vld [vmem:[#allocation2 + $0x50] sm:$0xff]
    %v79 = vld [vmem:[#allocation2 + $0x58] sm:$0xff]
    %v80 = vld [vmem:[#allocation2 + $0x60] sm:$0xff]
    %v81 = vld [vmem:[#allocation2 + $0x68] sm:$0xff]
    %v82 = vld [vmem:[#allocation2 + $0x70] sm:$0xff]
    %v83 = vld [vmem:[#allocation2 + $0x78] sm:$0xff]
    %v84 = vld [vmem:[#allocation3] sm:$0xf]
    %v85 = vld [vmem:[#allocation3 + $0x4] sm:$0xf]
    %v86 = vld [vmem:[#allocation3 + $0x8] sm:$0xf]
    %v87 = vld [vmem:[#allocation3 + $0xc] sm:$0xf]
    %v88 = vld [vmem:[#allocation3 + $0x10] sm:$0xf]
    %v89 = vld [vmem:[#allocation3 + $0x14] sm:$0xf]
    %v90 = vld [vmem:[#allocation3 + $0x18] sm:$0xf]
    %v91 = vld [vmem:[#allocation3 + $0x1c] sm:$0xf]
    %v92 = vld [vmem:[#allocation3 + $0x20] sm:$0xf]
    %v93 = vld [vmem:[#allocation3 + $0x24] sm:$0xf]
    %v94 = vld [vmem:[#allocation3 + $0x28] sm:$0xf]
    %v95 = vld [vmem:[#allocation3 + $0x2c] sm:$0xf]
    %v96 = vld [vmem:[#allocation3 + $0x30] sm:$0xf]
    %v97 = vld [vmem:[#allocation3 + $0x34] sm:$0xf]
    %v98 = vld [vmem:[#allocation3 + $0x38] sm:$0xf]
    %v99 = vld [vmem:[#allocation3 + $0x3c] sm:$0xf]
    %v100 = vld [vmem:[#allocation6] sm:$0xf]
    %v101 = vld [vmem:[#allocation6 + $0x4] sm:$0xf]
    %v102 = vld [vmem:[#allocation6 + $0x8] sm:$0xf]
    %v103 = vld [vmem:[#allocation6 + $0xc] sm:$0xf]
    %v104 = vld [vmem:[#allocation6 + $0x10] sm:$0xf]
    %v105 = vld [vmem:[#allocation6 + $0x14] sm:$0xf]
    %v106 = vld [vmem:[#allocation6 + $0x18] sm:$0xf]
    %v107 = vld [vmem:[#allocation6 + $0x1c] sm:$0xf]
    %v108 = vld [vmem:[#allocation6 + $0x20] sm:$0xf]
    %v109 = vld [vmem:[#allocation6 + $0x24] sm:$0xf]
    %v110 = vld [vmem:[#allocation6 + $0x28] sm:$0xf]
    %v111 = vld [vmem:[#allocation6 + $0x2c] sm:$0xf]
    %v112 = vld [vmem:[#allocation6 + $0x30] sm:$0xf]
    %v113 = vld [vmem:[#allocation6 + $0x34] sm:$0xf]
    %v114 = vld [vmem:[#allocation6 + $0x38] sm:$0xf]
    %v115 = vld [vmem:[#allocation6 + $0x3c] sm:$0xf]
    %v132 = vunpack.c.l.b16 %v84
    %v133 = vunpack.c.l.b16 %v85
    %v134 = vunpack.c.l.b16 %v86
    %v135 = vunpack.c.l.b16 %v87
    %v136 = vunpack.c.l.b16 %v88
    %v137 = vunpack.c.l.b16 %v89
    %v138 = vunpack.c.l.b16 %v90
    %v139 = vunpack.c.l.b16 %v91
    %v140 = vunpack.c.l.b16 %v92
    %v141 = vunpack.c.l.b16 %v93
    %v142 = vunpack.c.l.b16 %v94
    %v143 = vunpack.c.l.b16 %v95
    %v144 = vunpack.c.l.b16 %v96
    %v145 = vunpack.c.l.b16 %v97
    %v146 = vunpack.c.l.b16 %v98
    %v147 = vunpack.c.l.b16 %v99
    %v148 = vpack.c.b16 %v133, %v132
    %v149 = vpack.c.b16 %v135, %v134
    %v150 = vpack.c.b16 %v137, %v136
    %v151 = vpack.c.b16 %v139, %v138
    %v152 = vpack.c.b16 %v141, %v140
    %v153 = vpack.c.b16 %v143, %v142
    %v154 = vpack.c.b16 %v145, %v144
    %v155 = vpack.c.b16 %v147, %v146
    %v180 = vunpack.c.l.b16 %v100
    %v181 = vunpack.c.l.b16 %v101
    %v182 = vunpack.c.l.b16 %v102
    %v183 = vunpack.c.l.b16 %v103
    %v184 = vunpack.c.l.b16 %v104
    %v185 = vunpack.c.l.b16 %v105
    %v186 = vunpack.c.l.b16 %v106
    %v187 = vunpack.c.l.b16 %v107
    %v188 = vunpack.c.l.b16 %v108
    %v189 = vunpack.c.l.b16 %v109
    %v190 = vunpack.c.l.b16 %v110
    %v191 = vunpack.c.l.b16 %v111
    %v192 = vunpack.c.l.b16 %v112
    %v193 = vunpack.c.l.b16 %v113
    %v194 = vunpack.c.l.b16 %v114
    %v195 = vunpack.c.l.b16 %v115
    %v196 = vpack.c.b16 %v181, %v180
    %v197 = vpack.c.b16 %v183, %v182
    %v198 = vpack.c.b16 %v185, %v184
    %v199 = vpack.c.b16 %v187, %v186
    %v200 = vpack.c.b16 %v189, %v188
    %v201 = vpack.c.b16 %v191, %v190
    %v202 = vpack.c.b16 %v193, %v192
    %v203 = vpack.c.b16 %v195, %v194
    %212 = vmatpush.bf16.msra.mxu0 %v203
    %213 = vmatpush.bf16.msra.mxu0 %v202
    %214 = vmatpush.bf16.msra.mxu0 %v201
    %215 = vmatpush.bf16.msra.mxu0 %v200
    %216 = vmatpush.bf16.msra.mxu0 %v199
    %217 = vmatpush.bf16.msra.mxu0 %v198
    %218 = vmatpush.bf16.msra.mxu0 %v197
    %219 = vmatpush.bf16.msra.mxu0 %v196
    %220 = vmatmul.bf16.gmra.mxu0 %v148
    %v221 = vpop.f32.mrf.mxu0
    %v222 = vadd.f32 0.0, %v221
    %v223 = vpop.f32.mrf.mxu0
    %v224 = vadd.f32 0.0, %v223
    %225 = vmatmul.bf16.gmra.mxu0 %v149
    %v226 = vpop.f32.mrf.mxu0
    %v227 = vadd.f32 0.0, %v226
    %v228 = vpop.f32.mrf.mxu0
    %v229 = vadd.f32 0.0, %v228
    %230 = vmatmul.bf16.gmra.mxu0 %v150
    %v231 = vpop.f32.mrf.mxu0
    %v232 = vadd.f32 0.0, %v231
    %v233 = vpop.f32.mrf.mxu0
    %v234 = vadd.f32 0.0, %v233
    %235 = vmatmul.bf16.gmra.mxu0 %v151
    %v236 = vpop.f32.mrf.mxu0
    %v237 = vadd.f32 0.0, %v236
    %v238 = vpop.f32.mrf.mxu0
    %v239 = vadd.f32 0.0, %v238
    %240 = vmatmul.bf16.gmra.mxu0 %v152
    %v241 = vpop.f32.mrf.mxu0
    %v242 = vadd.f32 0.0, %v241
    %v243 = vpop.f32.mrf.mxu0
    %v244 = vadd.f32 0.0, %v243
    %245 = vmatmul.bf16.gmra.mxu0 %v153
    %v246 = vpop.f32.mrf.mxu0
    %v247 = vadd.f32 0.0, %v246
    %v248 = vpop.f32.mrf.mxu0
    %v249 = vadd.f32 0.0, %v248
    %250 = vmatmul.bf16.gmra.mxu0 %v154
    %v251 = vpop.f32.mrf.mxu0
    %v252 = vadd.f32 0.0, %v251
    %v253 = vpop.f32.mrf.mxu0
    %v254 = vadd.f32 0.0, %v253
    %255 = vmatmul.bf16.gmra.mxu0 %v155
    %v256 = vpop.f32.mrf.mxu0
    %v257 = vadd.f32 0.0, %v256
    %v258 = vpop.f32.mrf.mxu0
    %v259 = vadd.f32 0.0, %v258
    %260 = vdwg.mxu0
    %v261 = vadd.f32 %v68, %v222
    %v262 = vadd.f32 %v69, %v224
    %v263 = vadd.f32 %v70, %v227
    %v264 = vadd.f32 %v71, %v229
    %v265 = vadd.f32 %v72, %v232
    %v266 = vadd.f32 %v73, %v234
    %v267 = vadd.f32 %v74, %v237
    %v268 = vadd.f32 %v75, %v239
    %v269 = vadd.f32 %v76, %v242
    %v270 = vadd.f32 %v77, %v244
    %v271 = vadd.f32 %v78, %v247
    %v272 = vadd.f32 %v79, %v249
    %v273 = vadd.f32 %v80, %v252
    %v274 = vadd.f32 %v81, %v254
    %v275 = vadd.f32 %v82, %v257
    %v276 = vadd.f32 %v83, %v259
    %277 = vst [vmem:[#allocation2] sm:$0xff] %v261
    %278 = vst [vmem:[#allocation2 + $0x8] sm:$0xff] %v262
    %279 = vst [vmem:[#allocation2 + $0x10] sm:$0xff] %v263
    %280 = vst [vmem:[#allocation2 + $0x18] sm:$0xff] %v264
    %281 = vst [vmem:[#allocation2 + $0x20] sm:$0xff] %v265
    %282 = vst [vmem:[#allocation2 + $0x28] sm:$0xff] %v266
    %283 = vst [vmem:[#allocation2 + $0x30] sm:$0xff] %v267
    %284 = vst [vmem:[#allocation2 + $0x38] sm:$0xff] %v268
    %285 = vst [vmem:[#allocation2 + $0x40] sm:$0xff] %v269
    %286 = vst [vmem:[#allocation2 + $0x48] sm:$0xff] %v270
    %287 = vst [vmem:[#allocation2 + $0x50] sm:$0xff] %v271
    %288 = vst [vmem:[#allocation2 + $0x58] sm:$0xff] %v272
    %289 = vst [vmem:[#allocation2 + $0x60] sm:$0xff] %v273
    %290 = vst [vmem:[#allocation2 + $0x68] sm:$0xff] %v274
    %291 = vst [vmem:[#allocation2 + $0x70] sm:$0xff] %v275
    %292 = vst [vmem:[#allocation2 + $0x78] sm:$0xff] %v276
    %p293 = scmp.eq.s32.totalorder 0, 0
    %p294 = pnand %p293, %p48
    %p295 = pneg %p294
    // Predicated region
    $region22: #{tpu_custom_call.1} parent=1 // pred_check
      _
    $region23: #{tpu_custom_call.1} parent=1 // pred_check_branch
      %297 = sbr.rel (%p294) target = $region25
    $region24: #{tpu_custom_call.1} parent=1 // pred_region
      %298 = vst [vmem:[#allocation9] sm:$0x1] 0.0
      %299 = vst [vmem:[#allocation11] sm:$0x1] 0.0
    $region25: #{tpu_custom_call.1} parent=1 // pred_fallthru
      _
    // Predicated region
    $region26: #{tpu_custom_call.1} parent=1 // pred_check
      %p300 = pneg %p48
    $region27: #{tpu_custom_call.1} parent=1 // pred_check_branch
      %302 = sbr.rel (%p300) target = $region29
    $region28: #{tpu_custom_call.1} parent=1 // pred_region
      %v303 = vld [vmem:[#allocation2] sm:$0xff]
      %v304 = vld [vmem:[#allocation2 + $0x8] sm:$0xff]
      %v305 = vld [vmem:[#allocation2 + $0x10] sm:$0xff]
      %v306 = vld [vmem:[#allocation2 + $0x18] sm:$0xff]
      %v307 = vld [vmem:[#allocation2 + $0x20] sm:$0xff]
      %v308 = vld [vmem:[#allocation2 + $0x28] sm:$0xff]
      %v309 = vld [vmem:[#allocation2 + $0x30] sm:$0xff]
      %v310 = vld [vmem:[#allocation2 + $0x38] sm:$0xff]
      %v311 = vld [vmem:[#allocation2 + $0x40] sm:$0xff]
      %v312 = vld [vmem:[#allocation2 + $0x48] sm:$0xff]
      %v313 = vld [vmem:[#allocation2 + $0x50] sm:$0xff]
      %v314 = vld [vmem:[#allocation2 + $0x58] sm:$0xff]
      %v315 = vld [vmem:[#allocation2 + $0x60] sm:$0xff]
      %v316 = vld [vmem:[#allocation2 + $0x68] sm:$0xff]
      %v317 = vld [vmem:[#allocation2 + $0x70] sm:$0xff]
      %v318 = vld [vmem:[#allocation2 + $0x78] sm:$0xff]
      %319 = vst [vmem:[#allocation8] sm:$0xff] %v303
      %320 = vst [vmem:[#allocation8 + $0x8] sm:$0xff] %v304
      %321 = vst [vmem:[#allocation8 + $0x10] sm:$0xff] %v305
      %322 = vst [vmem:[#allocation8 + $0x18] sm:$0xff] %v306
      %323 = vst [vmem:[#allocation8 + $0x20] sm:$0xff] %v307
      %324 = vst [vmem:[#allocation8 + $0x28] sm:$0xff] %v308
      %325 = vst [vmem:[#allocation8 + $0x30] sm:$0xff] %v309
      %326 = vst [vmem:[#allocation8 + $0x38] sm:$0xff] %v310
      %327 = vst [vmem:[#allocation8 + $0x40] sm:$0xff] %v311
      %328 = vst [vmem:[#allocation8 + $0x48] sm:$0xff] %v312
      %329 = vst [vmem:[#allocation8 + $0x50] sm:$0xff] %v313
      %330 = vst [vmem:[#allocation8 + $0x58] sm:$0xff] %v314
      %331 = vst [vmem:[#allocation8 + $0x60] sm:$0xff] %v315
      %332 = vst [vmem:[#allocation8 + $0x68] sm:$0xff] %v316
      %333 = vst [vmem:[#allocation8 + $0x70] sm:$0xff] %v317
      %334 = vst [vmem:[#allocation8 + $0x78] sm:$0xff] %v318
      %v335 = vld [vmem:[#allocation9] sm:$0x1]
      %v336 = vadd.f32 %v303, %v304
      %v337 = vadd.f32 %v336, %v305
      %v338 = vadd.f32 %v337, %v306
      %v339 = vadd.f32 %v338, %v307
      %v340 = vadd.f32 %v339, %v308
      %v341 = vadd.f32 %v340, %v309
      %v342 = vadd.f32 %v341, %v310
      %v343 = vadd.f32 %v342, %v311
      %v344 = vadd.f32 %v343, %v312
      %v345 = vadd.f32 %v344, %v313
      %v346 = vadd.f32 %v345, %v314
      %v347 = vadd.f32 %v346, %v315
      %v348 = vadd.f32 %v347, %v316
      %v349 = vadd.f32 %v348, %v317
      %v350 = vadd.f32 %v349, %v318
      %v351 = vrot.slane %v350, 4
      %v352 = vadd.f32 %v350, %v351
      %v353 = vrot.slane %v352, 2
      %v354 = vadd.f32 %v352, %v353
      %v355 = vrot.slane %v354, 1
      %v356 = vadd.f32 %v354, %v355
      %v357 = vadd.f32 %v335, %v356
      %358 = vst [vmem:[#allocation9] sm:$0x1] %v357
      %v359 = vld [vmem:[#allocation11] sm:$0x1]
      %v360 = vmul.f32 %v303, %v303
      %v361 = vmul.f32 %v304, %v304
      %v362 = vmul.f32 %v305, %v305
      %v363 = vmul.f32 %v306, %v306
      %v364 = vmul.f32 %v307, %v307
      %v365 = vmul.f32 %v308, %v308
      %v366 = vmul.f32 %v309, %v309
      %v367 = vmul.f32 %v310, %v310
      %v368 = vmul.f32 %v311, %v311
      %v369 = vmul.f32 %v312, %v312
      %v370 = vmul.f32 %v313, %v313
      %v371 = vmul.f32 %v314, %v314
      %v372 = vmul.f32 %v315, %v315
      %v373 = vmul.f32 %v316, %v316
      %v374 = vmul.f32 %v317, %v317
      %v375 = vmul.f32 %v318, %v318
      %v376 = vadd.f32 %v360, %v361
      %v377 = vadd.f32 %v376, %v362
      %v378 = vadd.f32 %v377, %v363
      %v379 = vadd.f32 %v378, %v364
      %v380 = vadd.f32 %v379, %v365
      %v381 = vadd.f32 %v380, %v366
      %v382 = vadd.f32 %v381, %v367
      %v383 = vadd.f32 %v382, %v368
      %v384 = vadd.f32 %v383, %v369
      %v385 = vadd.f32 %v384, %v370
      %v386 = vadd.f32 %v385, %v371
      %v387 = vadd.f32 %v386, %v372
      %v388 = vadd.f32 %v387, %v373
      %v389 = vadd.f32 %v388, %v374
      %v390 = vadd.f32 %v389, %v375
      %v391 = vrot.slane %v390, 4
      %v392 = vadd.f32 %v390, %v391
      %v393 = vrot.slane %v392, 2
      %v394 = vadd.f32 %v392, %v393
      %v395 = vrot.slane %v394, 1
      %v396 = vadd.f32 %v394, %v395
      %v397 = vadd.f32 %v359, %v396
      %398 = vst [vmem:[#allocation11] sm:$0x1] %v397
    $region29: #{tpu_custom_call.1} parent=1 // pred_fallthru
      _
    // Predicated region
    $region30: #{tpu_custom_call.1} parent=1 // pred_check
      _
    $region31: #{tpu_custom_call.1} parent=1 // pred_check_branch
      %400 = sbr.rel (0) target = $region33
    $region32: #{tpu_custom_call.1} parent=1 // pred_region
      %402 = vsyncadd [#allocation5], 0
      %s403 = sshll.u32 [#allocation8], 4
      %s404 = int_to_ptr.vmem [resolvable:$true] %s403
      %s405 = sshll.u32 %s2, 4
      %s406 = int_to_ptr.hbm [resolvable:$true] %s405
      %411 = dma.vmem_to_hbm [thread:$0]  %s404, 2048, %s406, [#allocation5], 128, 128, 8
    $region33: #{tpu_custom_call.1} parent=1 // pred_fallthru
      _
    // Predicated region
    $region34: #{tpu_custom_call.1} parent=1 // pred_check
      _
    $region35: #{tpu_custom_call.1} parent=1 // pred_check_branch
      %413 = sbr.rel (0) target = $region37
    $region36: #{tpu_custom_call.1} parent=1 // pred_region
      %415 = vsyncadd [#allocation10], 0
      %s417 = sshll.u32 [#allocation9], 4
      %s418 = int_to_ptr.vmem [resolvable:$true] %s417
      %s419 = sshll.u32 %s3, 4
      %s420 = int_to_ptr.hbm [resolvable:$true] %s419
      %422 = dma.vmem_to_hbm [thread:$0]  %s418, 16, %s420, [#allocation10]
    $region37: #{tpu_custom_call.1} parent=1 // pred_fallthru
      _
    // Predicated region
    $region38: #{tpu_custom_call.1} parent=1 // pred_check
      _
    $region39: #{tpu_custom_call.1} parent=1 // pred_check_branch
      %424 = sbr.rel (0) target = $region41
    $region40: #{tpu_custom_call.1} parent=1 // pred_region
      %426 = vsyncadd [#allocation10], 0
      %s428 = sshll.u32 [#allocation11], 4
      %s429 = int_to_ptr.vmem [resolvable:$true] %s428
      %s430 = sshll.u32 %s4, 4
      %s431 = int_to_ptr.hbm [resolvable:$true] %s430
      %433 = dma.vmem_to_hbm [thread:$0]  %s429, 16, %s431, [#allocation10]
    $region41: #{tpu_custom_call.1} parent=1 // pred_fallthru
      _
    // Predicated region
    $region42: #{tpu_custom_call.1} parent=1 // pred_check
      _
    $region43: #{tpu_custom_call.1} parent=1 // pred_check_branch
      %435 = sbr.rel (0) target = $region45
    $region44: #{tpu_custom_call.1} parent=1 // pred_region
      %437 = dma.done [#allocation5], 2048
    $region45: #{tpu_custom_call.1} parent=1 // pred_fallthru
      _
    // Predicated region
    $region46: #{tpu_custom_call.1} parent=1 // pred_check
      _
    $region47: #{tpu_custom_call.1} parent=1 // pred_check_branch
      %439 = sbr.rel (0) target = $region49
    $region48: #{tpu_custom_call.1} parent=1 // pred_region
      %441 = dma.done [#allocation10], 16
    $region49: #{tpu_custom_call.1} parent=1 // pred_fallthru
      _
    // Predicated region
    $region50: #{tpu_custom_call.1} parent=1 // pred_check
      _
    $region51: #{tpu_custom_call.1} parent=1 // pred_check_branch
      %443 = sbr.rel (0) target = $region53
    $region52: #{tpu_custom_call.1} parent=1 // pred_region
      %445 = dma.done [#allocation10], 16
    $region53: #{tpu_custom_call.1} parent=1 // pred_fallthru
      _
    %446 = vsyncpa [#allocation4], 1
    %447 = vsyncpa [#allocation7], 1
    %448 = vsyncpa [#allocation5], 1
    %449 = vsyncpa [#allocation10], 1

</llo_original>
